<compile_context>
chip_gen: v6e
topology: v6e:2x2x1
jax: 0.10.0
libtpu: 0.0.40
codegen_flags: <defaults>
</compile_context>

<pallas_src>
import functools
import math
import numpy as np

import jax
import jax.numpy as jnp
from jax.experimental import pallas as pl
from jax.experimental.pallas import tpu as pltpu


def _round_up(x, m):
    return (x + m - 1) // m * m


def _cdiv(a, b):
    return (a + b - 1) // b


def _pe_kernel(mult_ref, coords_ref, out_ref, full_ref, *,
               dim, num_octaves, out_dim):
    """One grid step: encode a lane-dense (dim, tn) tile of points.

    mult_ref:   (O, 1)   f32  octave multipliers 2**(start+o) * pi
    coords_ref: (dim, tn)     points, point axis on the 128-lane axis
    out_ref:    (tn, out_dim) output tile in the final (points, features) layout
    full_ref:   (rows_pad, tn) f32 scratch holding the lane-dense encoding
    """
    O = num_octaves
    tn = coords_ref.shape[1]

    cf = coords_ref[...].astype(jnp.float32)           # f32 transcendental math
    m_b = jnp.broadcast_to(mult_ref[...], (O, tn))     # hoisted (O,1)->(O,tn)

    # Lane-dense encoding: feature rows on sublanes, points on lanes.
    full_ref[0:dim, :] = cf                            # coords passthrough
    sin_base = dim
    cos_base = dim + dim * O
    # NOTE: a double-angle recurrence could cut transcendental count ~15x for
    # the compute-bound (v7x) case; direct sin/cos kept for accuracy.
    for d in range(dim):                               # dim is tiny -> unroll
        scaled = m_b * cf[d:d + 1, :]                  # (O, tn), full-lane vregs
        full_ref[sin_base + d * O: sin_base + (d + 1) * O, :] = jnp.sin(scaled)
        full_ref[cos_base + d * O: cos_base + (d + 1) * O, :] = jnp.cos(scaled)

    # Single in-kernel XLU transpose to (points, features), then one
    # full-width store: the big tensor crosses HBM exactly once.
    full_t = jnp.transpose(full_ref[...], (1, 0))      # (tn, rows_pad)
    out_ref[...] = full_t[:, :out_dim].astype(out_ref.dtype)


def positional_encoding(coords, num_octaves=15, start_octave=0, tile_n=4096):
    """Pallas TPU positional encoding matching the PyTorch module.

    coords: (B, N, dim) float array. Returns (B, N, dim + 2*dim*num_octaves).
    """
    B, N, dim = coords.shape
    O = num_octaves
    out_dim = dim + 2 * dim * O
    M = B * N                                           # fold batch into points

    # Octave multipliers as an explicit (O, 1) kernel input (no captured
    # traced constants), computed exactly like the torch module.
    mult = (2.0 ** jnp.arange(start_octave, start_octave + O,
                              dtype=jnp.float32)) * math.pi
    mult = mult.reshape(O, 1).astype(jnp.float32)

    # Tiny layout plumbing on the input only: (B, N, dim) -> (dim, B*N) so the
    # point axis sits on the 128-lane axis inside the kernel.
    coords_t = jnp.transpose(coords.reshape(M, dim), (1, 0))

    # Tile the point axis. No padding: Pallas masks the ragged last block.
    tn = min(tile_n, _round_up(M, 128))
    if M > 128 and _cdiv(M, tn) < 2:                    # >=2 steps for v7x's 2 TCs
        tn = max(128, _round_up(_cdiv(M, 2), 128))
    grid = (_cdiv(M, tn),)
    rows_pad = _round_up(out_dim, 128)                  # aligned transpose source

    kernel = functools.partial(_pe_kernel, dim=dim, num_octaves=O,
                               out_dim=out_dim)

    out = pl.pallas_call(
        kernel,
        out_shape=jax.ShapeDtypeStruct((M, out_dim), coords.dtype),
        grid=grid,
        in_specs=[
            pl.BlockSpec((O, 1), lambda j: (0, 0)),      # multipliers (fetched once)
            pl.BlockSpec((dim, tn), lambda j: (0, j)),   # points tile (lane-dense)
        ],
        out_specs=pl.BlockSpec((tn, out_dim), lambda j: (j, 0)),
        scratch_shapes=[pltpu.VMEM((rows_pad, tn), jnp.float32)],
        compiler_params=pltpu.CompilerParams(
            dimension_semantics=("parallel",)),
    )(mult, coords_t)

    return out.reshape(B, N, out_dim)


def positional_encoding_ref(coords, num_octaves=15, start_octave=0):
    """Pure-JAX reference mirroring the PyTorch forward."""
    B, N, dim = coords.shape
    octaves = jnp.arange(start_octave, start_octave + num_octaves,
                         dtype=coords.dtype)
    multipliers = 2.0 ** octaves * math.pi
    scaled = coords[..., None] * multipliers                  # (B, N, dim, O)
    sines = jnp.sin(scaled).reshape(B, N, dim * num_octaves)
    cosines = jnp.cos(scaled).reshape(B, N, dim * num_octaves)
    return jnp.concatenate((coords, sines, cosines), axis=-1)


if __name__ == "__main__":
    key = jax.random.PRNGKey(0)
    B, N, dim = 2, 8, 3
    O, S = 15, 0
    coords = jax.random.uniform(key, (B, N, dim), dtype=jnp.float32,
                                minval=-1.0, maxval=1.0)

    out = positional_encoding(coords, num_octaves=O, start_octave=S)
    out = jax.block_until_ready(out)
    assert out.shape == (B, N, dim + 2 * dim * O), out.shape

    ref = positional_encoding_ref(coords, num_octaves=O, start_octave=S)
    out_np = np.asarray(out, dtype=np.float64)
    ref_np = np.asarray(ref, dtype=np.float64)

    # Per-element tolerance: tight for the coords passthrough and low octaves,
    # proportional to |argument| for the highest octaves (f32 sin/cos
    # argument-reduction error grows with |x|).
    mult64 = (2.0 ** np.arange(S, S + O, dtype=np.float64)) * math.pi
    arg = np.abs(np.asarray(coords, np.float64))[..., None] * mult64
    arg = arg.reshape(B, N, dim * O)
    tol = np.concatenate([np.full((B, N, dim), 1e-6),
                          1e-5 + 1e-6 * arg,
                          1e-5 + 1e-6 * arg], axis=-1)
    err = np.abs(out_np - ref_np)
    assert np.all(err <= tol), f"max abs err {err.max():.3e}"

    print("KERNEL_OK")
</pallas_src>

<mosaic_0001>
module attributes {stable_mosaic.version = 11 : i64} {
  func.func @_pe_kernel(%arg0: i32, %arg1: memref<15x1xf32, #tpu.memory_space<vmem>>, %arg2: memref<3x128xf32, #tpu.memory_space<vmem>>, %arg3: memref<128x93xf32, #tpu.memory_space<vmem>>, %arg4: memref<128x128xf32, #tpu.memory_space<vmem>>) attributes {dimension_semantics = [#tpu.dimension_semantics<parallel>], iteration_bounds = array<i64: 1>, scalar_prefetch = 0 : i64, scratch_operands = 1 : i64, tpu.core_type = #tpu.core_type<tc>, window_params = [{pipeline_mode = #tpu.pipeline_mode<synchronous>, transform_indices = @transform_0, window_bounds = array<i64: 15, 1>}, {transform_indices = @transform_1, window_bounds = array<i64: 3, 128>}, {transform_indices = @transform_2, window_bounds = array<i64: 128, 93>}]} {
    %c0 = arith.constant 0 : index
    %c0_0 = arith.constant 0 : index
    %0 = vector.load %arg2[%c0, %c0_0] : memref<3x128xf32, #tpu.memory_space<vmem>>, vector<3x128xf32>
    %c0_1 = arith.constant 0 : index
    %c0_2 = arith.constant 0 : index
    %1 = vector.load %arg1[%c0_1, %c0_2] : memref<15x1xf32, #tpu.memory_space<vmem>>, vector<15x1xf32>
    %2 = vector.shape_cast %1 : vector<15x1xf32> to vector<15x1xf32>
    %3 = vector.broadcast %2 : vector<15x1xf32> to vector<15x128xf32>
    %c0_3 = arith.constant 0 : index
    %c0_4 = arith.constant 0 : index
    %4 = vector.load %arg4[%c0_3, %c0_4] : memref<128x128xf32, #tpu.memory_space<vmem>>, vector<3x128xf32>
    tpu.vector_store %arg4[%c0_3, %c0_4], %0 {strides = array<i32>} : memref<128x128xf32, #tpu.memory_space<vmem>>, vector<3x128xf32>,
    %5 = vector.extract_strided_slice %0 {offsets = [0, 0], sizes = [1, 128], strides = [1, 1]} : vector<3x128xf32> to vector<1x128xf32>
    %6 = vector.broadcast %5 : vector<1x128xf32> to vector<15x128xf32>
    %7 = arith.mulf %3, %6 : vector<15x128xf32>
    %8 = math.sin %7 : vector<15x128xf32>
    %c3 = arith.constant 3 : index
    %c0_5 = arith.constant 0 : index
    %9 = vector.load %arg4[%c3, %c0_5] : memref<128x128xf32, #tpu.memory_space<vmem>>, vector<15x128xf32>
    tpu.vector_store %arg4[%c3, %c0_5], %8 {strides = array<i32>} : memref<128x128xf32, #tpu.memory_space<vmem>>, vector<15x128xf32>,
    %10 = math.cos %7 : vector<15x128xf32>
    %c48 = arith.constant 48 : index
    %c0_6 = arith.constant 0 : index
    %11 = vector.load %arg4[%c48, %c0_6] : memref<128x128xf32, #tpu.memory_space<vmem>>, vector<15x128xf32>
    tpu.vector_store %arg4[%c48, %c0_6], %10 {strides = array<i32>} : memref<128x128xf32, #tpu.memory_space<vmem>>, vector<15x128xf32>,
    %12 = vector.extract_strided_slice %0 {offsets = [1, 0], sizes = [1, 128], strides = [1, 1]} : vector<3x128xf32> to vector<1x128xf32>
    %13 = vector.broadcast %12 : vector<1x128xf32> to vector<15x128xf32>
    %14 = arith.mulf %3, %13 : vector<15x128xf32>
    %15 = math.sin %14 : vector<15x128xf32>
    %c18 = arith.constant 18 : index
    %c0_7 = arith.constant 0 : index
    %16 = vector.load %arg4[%c18, %c0_7] : memref<128x128xf32, #tpu.memory_space<vmem>>, vector<15x128xf32>
    tpu.vector_store %arg4[%c18, %c0_7], %15 {strides = array<i32>} : memref<128x128xf32, #tpu.memory_space<vmem>>, vector<15x128xf32>,
    %17 = math.cos %14 : vector<15x128xf32>
    %c63 = arith.constant 63 : index
    %c0_8 = arith.constant 0 : index
    %18 = vector.load %arg4[%c63, %c0_8] : memref<128x128xf32, #tpu.memory_space<vmem>>, vector<15x128xf32>
    tpu.vector_store %arg4[%c63, %c0_8], %17 {strides = array<i32>} : memref<128x128xf32, #tpu.memory_space<vmem>>, vector<15x128xf32>,
    %19 = vector.extract_strided_slice %0 {offsets = [2, 0], sizes = [1, 128], strides = [1, 1]} : vector<3x128xf32> to vector<1x128xf32>
    %20 = vector.broadcast %19 : vector<1x128xf32> to vector<15x128xf32>
    %21 = arith.mulf %3, %20 : vector<15x128xf32>
    %22 = math.sin %21 : vector<15x128xf32>
    %c33 = arith.constant 33 : index
    %c0_9 = arith.constant 0 : index
    %23 = vector.load %arg4[%c33, %c0_9] : memref<128x128xf32, #tpu.memory_space<vmem>>, vector<15x128xf32>
    tpu.vector_store %arg4[%c33, %c0_9], %22 {strides = array<i32>} : memref<128x128xf32, #tpu.memory_space<vmem>>, vector<15x128xf32>,
    %24 = math.cos %21 : vector<15x128xf32>
    %c78 = arith.constant 78 : index
    %c0_10 = arith.constant 0 : index
    %25 = vector.load %arg4[%c78, %c0_10] : memref<128x128xf32, #tpu.memory_space<vmem>>, vector<15x128xf32>
    tpu.vector_store %arg4[%c78, %c0_10], %24 {strides = array<i32>} : memref<128x128xf32, #tpu.memory_space<vmem>>, vector<15x128xf32>,
    %c0_11 = arith.constant 0 : index
    %c0_12 = arith.constant 0 : index
    %26 = vector.load %arg4[%c0_11, %c0_12] : memref<128x128xf32, #tpu.memory_space<vmem>>, vector<128x128xf32>
    %27 = tpu.transpose %26, [1, 0] : vector<128x128xf32> -> vector<128x128xf32>
    %28 = vector.extract_strided_slice %27 {offsets = [0, 0], sizes = [128, 93], strides = [1, 1]} : vector<128x128xf32> to vector<128x93xf32>
    %c0_13 = arith.constant 0 : index
    %c0_14 = arith.constant 0 : index
    %29 = vector.load %arg3[%c0_13, %c0_14] : memref<128x93xf32, #tpu.memory_space<vmem>>, vector<128x93xf32>
    tpu.vector_store %arg3[%c0_13, %c0_14], %28 {strides = array<i32>} : memref<128x93xf32, #tpu.memory_space<vmem>>, vector<128x93xf32>,
    return
  }
  func.func @transform_0(%arg0: i32) -> (i32, i32) {
    %c0_i32 = arith.constant 0 : i32
    %c0_i32_0 = arith.constant 0 : i32
    %c0_i32_1 = arith.constant 0 : i32
    return %c0_i32, %c0_i32_0 : i32, i32
  }
  func.func @transform_1(%arg0: i32) -> (i32, i32) {
    %c0_i32 = arith.constant 0 : i32
    %c0_i32_0 = arith.constant 0 : i32
    return %c0_i32, %arg0 : i32, i32
  }
  func.func @transform_2(%arg0: i32) -> (i32, i32) {
    %c0_i32 = arith.constant 0 : i32
    %c0_i32_0 = arith.constant 0 : i32
    return %arg0, %c0_i32 : i32, i32
  }
}

</mosaic_0001>

<llo_original>
// kernel: tpu_custom_call.1
$region0: #{tpu_custom_call.1}
  #allocation0 [shape = 'u32[]', space=smem, size = 0x4, offset = 0x4, fixed_abs, tag = 'smem constant byte address 0x4 - core index']
  #allocation1 [shape = 'u32[144,128]{1,0:T(1,128)}', space=vmem, size = 0x12000, scoped, tag = 'internal scratch']
  #allocation2 [shape = 'f32[128,128]{1,0:T(8,128)}', space=vmem, size = 0x10000, scoped, tag = 'scratch operand']
  %s0 = inlined_call_operand.vmem [shape: f32[15,1], index: 0, kind: input, shape index: {}]
  %s1 = inlined_call_operand.vmem [shape: f32[3,16], index: 1, kind: input, shape index: {}]
  %s2 = inlined_call_operand.hbm [shape: f32[16,93], index: 2, kind: output, shape index: {}]
  %s3 = sld [smem:[#allocation0]]
  $region18: #{tpu_custom_call.1} parent=0
    _
  %s5 = ssub.s32 1, %s3
  %s6 = scalar_select 0, %s5, %s3
  $region1: #{tpu_custom_call.1} parent=0
    #allocation3 [shape = 'u8[65536]{0}', space=vmem, size = 0x10000, scoped, tag = 'output window, operand 0, single buffered']
    #allocation4 [shape = 's32[1]{0}', space=sflag, size = 0x4, scoped, tag = 'scoped memory for tpu_custom_call.1']
    %7 = vsyncpa [#allocation4], 0
    // Predicated region
    $region2: #{tpu_custom_call.1} parent=1 // pred_check
      _
    $region3: #{tpu_custom_call.1} parent=1 // pred_check_branch
      %9 = sbr.rel (0) target = $region5
    $region4: #{tpu_custom_call.1} parent=1 // pred_region
      _
    $region5: #{tpu_custom_call.1} parent=1 // pred_fallthru
      _
    // Predicated region
    $region6: #{tpu_custom_call.1} parent=1 // pred_check
      _
    $region7: #{tpu_custom_call.1} parent=1 // pred_check_branch
      %11 = sbr.rel (0) target = $region9
    $region8: #{tpu_custom_call.1} parent=1 // pred_region
      _
    $region9: #{tpu_custom_call.1} parent=1 // pred_fallthru
      _
    %v12 = vld [vmem:[%s1] sm:$0x7]
    %v13 = vld [vmem:[%s0] sm:$0xff]
    %v14 = vld [vmem:[%s0 + $0x8] sm:$0x7f]
    %16 = vset.pattern.permute.xlu0 0
    %17 = vperm.xlu0 %16, %v13
    %v18 = vpop.permute.xlu0 %17
    %21 = vset.pattern.permute.xlu0 0
    %22 = vperm.xlu0 %21, %v14
    %v23 = vpop.permute.xlu0 %22
    %25 = vst [vmem:[#allocation2] sm:$0x7] %v12
    %v26 = vlaneseq
    %v27 = vshrl.u32 %v26, 7
    %v28 = vsub.s32 0, %v27
    %v29 = vrot.slane %v12, %v28
    %v30 = vmul.f32 %v18, %v29
    %v31 = vmul.f32 %v23, %v29
    %v32 = vand.u32 2147483647, %v30
    %vm33 = vcmp.le.f32.partialorder %v32, 0.7853982
    %vm34 = vcmp.lt.s32.totalorder %v30, 0
    %v35 = vand.u32 %v30, 2139095040
    %v36 = vshrl.u32 %v35, 23
    %v37 = vsub.s32 %v36, 127
    %v38 = vand.u32 2147483647, %v30
    %v39 = vand.u32 %v38, 8388607
    %v40 = vor.u32 %v39, 8388608
    %v41 = vsub.s32 0, %v40
    %v42 = vadd.s32 %v37, 1
    %vm43 = vcmp.gt.s32.totalorder %v42, 0
    %v44 = vsel %vm43, %v42, 0
    %v45 = vshrl.u32 %v44, 5
    %v46 = vand.u32 %v44, 31
    %v47 = vsub.s32 32, %v46
    %v48 = vshrl.u32 683565275, %v47
    %v49 = vshll.u32 683565275, %v46
    %v50 = vshrl.u32 2475754826, %v47
    %v51 = vor.u32 %v49, %v50
    %v52 = vshll.u32 2475754826, %v46
    %v53 = vshrl.u32 2131351028, %v47
    %v54 = vor.u32 %v52, %v53
    %v55 = vshll.u32 2131351028, %v46
    %v56 = vshrl.u32 2102212464, %v47
    %v57 = vor.u32 %v55, %v56
    %v58 = vshll.u32 2102212464, %v46
    %v59 = vshrl.u32 920167782, %v47
    %v60 = vor.u32 %v58, %v59
    %v61 = vshll.u32 920167782, %v46
    %v62 = vshrl.u32 1326507024, %v47
    %v63 = vor.u32 %v61, %v62
    %vm64 = vcmp.lt.s32.totalorder %v45, 1
    %vm65 = vcmp.lt.s32.totalorder %v45, 2
    %vm66 = vcmp.lt.s32.totalorder %v45, 3
    %vm67 = vcmp.lt.s32.totalorder %v45, 4
    %v68 = vsel %vm64, %v48, %v51
    %v69 = vsel %vm67, %v57, 2102212464
    %v70 = vsel %vm66, %v54, %v69
    %v71 = vsel %vm65, %v68, %v70
    %v72 = vsel %vm64, %v51, %v54
    %v73 = vsel %vm67, %v60, 920167782
    %v74 = vsel %vm66, %v57, %v73
    %v75 = vsel %vm65, %v72, %v74
    %v76 = vsel %vm64, %v54, %v57
    %v77 = vsel %vm67, %v63, 1326507024
    %v78 = vsel %vm66, %v60, %v77
    %v79 = vsel %vm65, %v76, %v78
    %v80 = vshll.u32 %v40, 8
    %v81 = vmul.u32.u64.compose %v80, %v79
    %v82 = vextract.low.u32 %v81
    %v83 = vextract.high.u32 %v81
    %v84 = vmul.u32.u64.compose %v80, %v75
    %v85 = vextract.low.u32 %v84
    %v86 = vextract.high.u32 %v84
    %v87 = vmul.u32 %v80, %v71
    %v88 = vadd.s32 %v83, %v85
    %vm89 = vc.u32 %v83, %v85
    %v90 = vadd.s32 %v86, 1
    %v91 = vsel %vm89, %v90, %v86
    %v92 = vadd.s32 %v87, %v91
    %v93 = vadd.s32 %v92, 536870912
    %v94 = vshrl.u32 %v93, 30
    %v95 = vshll.u32 %v94, 30
    %v96 = vsub.s32 %v92, %v95
    %vm97 = vcmp.lt.s32.totalorder %v96, 0
    %v98 = vsub.s32 0, %v96
    %v99 = vsel %vm97, %v98, %v96
    %v100 = vclz %v99
    %v101 = vsub.s32 %v100, 2
    %vm102 = vcmp.gt.s32.totalorder 0, %v101
    %v103 = vsel %vm102, 0, %v101
    %v104 = vsub.s32 32, %v103
    %v105 = vshll.u32 %v96, %v103
    %v106 = vshrl.u32 %v88, %v104
    %v107 = vor.u32 %v105, %v106
    %v108 = vsub.s32 4294967266, %v103
    %v109 = vadd.s32 %v108, 127
    %v110 = vshll.u32 %v109, 23
    %v111 = vor.u32 4788187, %v110
    %v112 = vand.u32 2147483647, %v111
    %v114 = vcvt.s32.f32 %v107
    %v115 = vmul.f32 %v114, %v112
    %v116 = vxor.u32 %v115, 2147483648
    %v117 = vsel %vm34, %v116, %v115
    %v118 = vsub.s32 4, %v94
    %v119 = vsel %vm34, %v118, %v94
    %v120 = vsel %vm33, %v30, %v117
    %v121 = vsel %vm33, 0, %v119
    %v122 = vcosq.f32.pop %v120
    %v123 = vsinq.f32.pop %v120
    %vm124 = vweird.f32 %v30
    %v125 = vadd.s32 %v121, 3
    %v126 = vand.u32 %v125, 3
    %vm127 = vcmp.lt.s32.totalorder %v126, 2
    %vm128 = vcmp.eq.s32.totalorder %v126, 0
    %v129 = vxor.u32 %v123, 2147483648
    %v130 = vsel %vm128, %v122, %v129
    %vm131 = vcmp.eq.s32.totalorder %v126, 2
    %v132 = vxor.u32 %v122, 2147483648
    %v133 = vsel %vm131, %v132, %v123
    %v134 = vsel %vm127, %v130, %v133
    %v135 = vsel %vm124, nan, %v134
    %v136 = vand.u32 2147483647, %v31
    %vm137 = vcmp.le.f32.partialorder %v136, 0.7853982
    %vm138 = vcmp.lt.s32.totalorder %v31, 0
    %v139 = vand.u32 %v31, 2139095040
    %v140 = vshrl.u32 %v139, 23
    %v141 = vsub.s32 %v140, 127
    %v142 = vand.u32 2147483647, %v31
    %v143 = vand.u32 %v142, 8388607
    %v144 = vor.u32 %v143, 8388608
    %v145 = vsub.s32 0, %v144
    %v146 = vadd.s32 %v141, 1
    %vm147 = vcmp.gt.s32.totalorder %v146, 0
    %v148 = vsel %vm147, %v146, 0
    %v149 = vshrl.u32 %v148, 5
    %v150 = vand.u32 %v148, 31
    %v151 = vsub.s32 32, %v150
    %v152 = vshrl.u32 683565275, %v151
    %v153 = vshll.u32 683565275, %v150
    %v154 = vshrl.u32 2475754826, %v151
    %v155 = vor.u32 %v153, %v154
    %v156 = vshll.u32 2475754826, %v150
    %v157 = vshrl.u32 2131351028, %v151
    %v158 = vor.u32 %v156, %v157
    %v159 = vshll.u32 2131351028, %v150
    %v160 = vshrl.u32 2102212464, %v151
    %v161 = vor.u32 %v159, %v160
    %v162 = vshll.u32 2102212464, %v150
    %v163 = vshrl.u32 920167782, %v151
    %v164 = vor.u32 %v162, %v163
    %v165 = vshll.u32 920167782, %v150
    %v166 = vshrl.u32 1326507024, %v151
    %v167 = vor.u32 %v165, %v166
    %vm168 = vcmp.lt.s32.totalorder %v149, 1
    %vm169 = vcmp.lt.s32.totalorder %v149, 2
    %vm170 = vcmp.lt.s32.totalorder %v149, 3
    %vm171 = vcmp.lt.s32.totalorder %v149, 4
    %v172 = vsel %vm168, %v152, %v155
    %v173 = vsel %vm171, %v161, 2102212464
    %v174 = vsel %vm170, %v158, %v173
    %v175 = vsel %vm169, %v172, %v174
    %v176 = vsel %vm168, %v155, %v158
    %v177 = vsel %vm171, %v164, 920167782
    %v178 = vsel %vm170, %v161, %v177
    %v179 = vsel %vm169, %v176, %v178
    %v180 = vsel %vm168, %v158, %v161
    %v181 = vsel %vm171, %v167, 1326507024
    %v182 = vsel %vm170, %v164, %v181
    %v183 = vsel %vm169, %v180, %v182
    %v184 = vshll.u32 %v144, 8
    %v185 = vmul.u32.u64.compose %v184, %v183
    %v186 = vextract.low.u32 %v185
    %v187 = vextract.high.u32 %v185
    %v188 = vmul.u32.u64.compose %v184, %v179
    %v189 = vextract.low.u32 %v188
    %v190 = vextract.high.u32 %v188
    %v191 = vmul.u32 %v184, %v175
    %v192 = vadd.s32 %v187, %v189
    %vm193 = vc.u32 %v187, %v189
    %v194 = vadd.s32 %v190, 1
    %v195 = vsel %vm193, %v194, %v190
    %v196 = vadd.s32 %v191, %v195
    %v197 = vadd.s32 %v196, 536870912
    %v198 = vshrl.u32 %v197, 30
    %v199 = vshll.u32 %v198, 30
    %v200 = vsub.s32 %v196, %v199
    %vm201 = vcmp.lt.s32.totalorder %v200, 0
    %v202 = vsub.s32 0, %v200
    %v203 = vsel %vm201, %v202, %v200
    %v204 = vclz %v203
    %v205 = vsub.s32 %v204, 2
    %vm206 = vcmp.gt.s32.totalorder 0, %v205
    %v207 = vsel %vm206, 0, %v205
    %v208 = vsub.s32 32, %v207
    %v209 = vshll.u32 %v200, %v207
    %v210 = vshrl.u32 %v192, %v208
    %v211 = vor.u32 %v209, %v210
    %v212 = vsub.s32 4294967266, %v207
    %v213 = vadd.s32 %v212, 127
    %v214 = vshll.u32 %v213, 23
    %v215 = vor.u32 4788187, %v214
    %v216 = vand.u32 2147483647, %v215
    %v218 = vcvt.s32.f32 %v211
    %v219 = vmul.f32 %v218, %v216
    %v220 = vxor.u32 %v219, 2147483648
    %v221 = vsel %vm138, %v220, %v219
    %v222 = vsub.s32 4, %v198
    %v223 = vsel %vm138, %v222, %v198
    %v224 = vsel %vm137, %v31, %v221
    %v225 = vsel %vm137, 0, %v223
    %v226 = vcosq.f32.pop %v224
    %v227 = vsinq.f32.pop %v224
    %vm228 = vweird.f32 %v31
    %v229 = vadd.s32 %v225, 3
    %v230 = vand.u32 %v229, 3
    %vm231 = vcmp.lt.s32.totalorder %v230, 2
    %vm232 = vcmp.eq.s32.totalorder %v230, 0
    %v233 = vxor.u32 %v227, 2147483648
    %v234 = vsel %vm232, %v226, %v233
    %vm235 = vcmp.eq.s32.totalorder %v230, 2
    %v236 = vxor.u32 %v226, 2147483648
    %v237 = vsel %vm235, %v236, %v227
    %v238 = vsel %vm231, %v234, %v237
    %v239 = vsel %vm228, nan, %v238
    %240 = vst [vmem:[#allocation2 + $0x3] sm:$0xff] %v135
    %241 = vst [vmem:[#allocation2 + $0xb] sm:$0x7f] %v239
    %v242 = vand.u32 2147483647, %v30
    %vm243 = vcmp.le.f32.partialorder %v242, 0.7853982
    %vm244 = vcmp.lt.s32.totalorder %v30, 0
    %v245 = vand.u32 %v30, 2139095040
    %v246 = vshrl.u32 %v245, 23
    %v247 = vsub.s32 %v246, 127
    %v248 = vand.u32 2147483647, %v30
    %v249 = vand.u32 %v248, 8388607
    %v250 = vor.u32 %v249, 8388608
    %v251 = vsub.s32 0, %v250
    %v252 = vadd.s32 %v247, 1
    %vm253 = vcmp.gt.s32.totalorder %v252, 0
    %v254 = vsel %vm253, %v252, 0
    %v255 = vshrl.u32 %v254, 5
    %v256 = vand.u32 %v254, 31
    %v257 = vsub.s32 32, %v256
    %v258 = vshrl.u32 683565275, %v257
    %v259 = vshll.u32 683565275, %v256
    %v260 = vshrl.u32 2475754826, %v257
    %v261 = vor.u32 %v259, %v260
    %v262 = vshll.u32 2475754826, %v256
    %v263 = vshrl.u32 2131351028, %v257
    %v264 = vor.u32 %v262, %v263
    %v265 = vshll.u32 2131351028, %v256
    %v266 = vshrl.u32 2102212464, %v257
    %v267 = vor.u32 %v265, %v266
    %v268 = vshll.u32 2102212464, %v256
    %v269 = vshrl.u32 920167782, %v257
    %v270 = vor.u32 %v268, %v269
    %v271 = vshll.u32 920167782, %v256
    %v272 = vshrl.u32 1326507024, %v257
    %v273 = vor.u32 %v271, %v272
    %vm274 = vcmp.lt.s32.totalorder %v255, 1
    %vm275 = vcmp.lt.s32.totalorder %v255, 2
    %vm276 = vcmp.lt.s32.totalorder %v255, 3
    %vm277 = vcmp.lt.s32.totalorder %v255, 4
    %v278 = vsel %vm274, %v258, %v261
    %v279 = vsel %vm277, %v267, 2102212464
    %v280 = vsel %vm276, %v264, %v279
    %v281 = vsel %vm275, %v278, %v280
    %v282 = vsel %vm274, %v261, %v264
    %v283 = vsel %vm277, %v270, 920167782
    %v284 = vsel %vm276, %v267, %v283
    %v285 = vsel %vm275, %v282, %v284
    %v286 = vsel %vm274, %v264, %v267
    %v287 = vsel %vm277, %v273, 1326507024
    %v288 = vsel %vm276, %v270, %v287
    %v289 = vsel %vm275, %v286, %v288
    %v290 = vshll.u32 %v250, 8
    %v291 = vmul.u32.u64.compose %v290, %v289
    %v292 = vextract.low.u32 %v291
    %v293 = vextract.high.u32 %v291
    %v294 = vmul.u32.u64.compose %v290, %v285
    %v295 = vextract.low.u32 %v294
    %v296 = vextract.high.u32 %v294
    %v297 = vmul.u32 %v290, %v281
    %v298 = vadd.s32 %v293, %v295
    %vm299 = vc.u32 %v293, %v295
    %v300 = vadd.s32 %v296, 1
    %v301 = vsel %vm299, %v300, %v296
    %v302 = vadd.s32 %v297, %v301
    %v303 = vadd.s32 %v302, 536870912
    %v304 = vshrl.u32 %v303, 30
    %v305 = vshll.u32 %v304, 30
    %v306 = vsub.s32 %v302, %v305
    %vm307 = vcmp.lt.s32.totalorder %v306, 0
    %v308 = vsub.s32 0, %v306
    %v309 = vsel %vm307, %v308, %v306
    %v310 = vclz %v309
    %v311 = vsub.s32 %v310, 2
    %vm312 = vcmp.gt.s32.totalorder 0, %v311
    %v313 = vsel %vm312, 0, %v311
    %v314 = vsub.s32 32, %v313
    %v315 = vshll.u32 %v306, %v313
    %v316 = vshrl.u32 %v298, %v314
    %v317 = vor.u32 %v315, %v316
    %v318 = vsub.s32 4294967266, %v313
    %v319 = vadd.s32 %v318, 127
    %v320 = vshll.u32 %v319, 23
    %v321 = vor.u32 4788187, %v320
    %v322 = vand.u32 2147483647, %v321
    %v324 = vcvt.s32.f32 %v317
    %v325 = vmul.f32 %v324, %v322
    %v326 = vxor.u32 %v325, 2147483648
    %v327 = vsel %vm244, %v326, %v325
    %v328 = vsub.s32 4, %v304
    %v329 = vsel %vm244, %v328, %v304
    %v330 = vsel %vm243, %v30, %v327
    %v331 = vsel %vm243, 0, %v329
    %v332 = vcosq.f32.pop %v330
    %v333 = vsinq.f32.pop %v330
    %vm334 = vweird.f32 %v30
    %v335 = vand.u32 %v331, 3
    %vm336 = vcmp.lt.s32.totalorder %v335, 2
    %vm337 = vcmp.eq.s32.totalorder %v335, 0
    %v338 = vxor.u32 %v333, 2147483648
    %v339 = vsel %vm337, %v332, %v338
    %vm340 = vcmp.eq.s32.totalorder %v335, 2
    %v341 = vxor.u32 %v332, 2147483648
    %v342 = vsel %vm340, %v341, %v333
    %v343 = vsel %vm336, %v339, %v342
    %v344 = vsel %vm334, nan, %v343
    %v345 = vand.u32 2147483647, %v31
    %vm346 = vcmp.le.f32.partialorder %v345, 0.7853982
    %vm347 = vcmp.lt.s32.totalorder %v31, 0
    %v348 = vand.u32 %v31, 2139095040
    %v349 = vshrl.u32 %v348, 23
    %v350 = vsub.s32 %v349, 127
    %v351 = vand.u32 2147483647, %v31
    %v352 = vand.u32 %v351, 8388607
    %v353 = vor.u32 %v352, 8388608
    %v354 = vsub.s32 0, %v353
    %v355 = vadd.s32 %v350, 1
    %vm356 = vcmp.gt.s32.totalorder %v355, 0
    %v357 = vsel %vm356, %v355, 0
    %v358 = vshrl.u32 %v357, 5
    %v359 = vand.u32 %v357, 31
    %v360 = vsub.s32 32, %v359
    %v361 = vshrl.u32 683565275, %v360
    %v362 = vshll.u32 683565275, %v359
    %v363 = vshrl.u32 2475754826, %v360
    %v364 = vor.u32 %v362, %v363
    %v365 = vshll.u32 2475754826, %v359
    %v366 = vshrl.u32 2131351028, %v360
    %v367 = vor.u32 %v365, %v366
    %v368 = vshll.u32 2131351028, %v359
    %v369 = vshrl.u32 2102212464, %v360
    %v370 = vor.u32 %v368, %v369
    %v371 = vshll.u32 2102212464, %v359
    %v372 = vshrl.u32 920167782, %v360
    %v373 = vor.u32 %v371, %v372
    %v374 = vshll.u32 920167782, %v359
    %v375 = vshrl.u32 1326507024, %v360
    %v376 = vor.u32 %v374, %v375
    %vm377 = vcmp.lt.s32.totalorder %v358, 1
    %vm378 = vcmp.lt.s32.totalorder %v358, 2
    %vm379 = vcmp.lt.s32.totalorder %v358, 3
    %vm380 = vcmp.lt.s32.totalorder %v358, 4
    %v381 = vsel %vm377, %v361, %v364
    %v382 = vsel %vm380, %v370, 2102212464
    %v383 = vsel %vm379, %v367, %v382
    %v384 = vsel %vm378, %v381, %v383
    %v385 = vsel %vm377, %v364, %v367
    %v386 = vsel %vm380, %v373, 920167782
    %v387 = vsel %vm379, %v370, %v386
    %v388 = vsel %vm378, %v385, %v387
    %v389 = vsel %vm377, %v367, %v370
    %v390 = vsel %vm380, %v376, 1326507024
    %v391 = vsel %vm379, %v373, %v390
    %v392 = vsel %vm378, %v389, %v391
    %v393 = vshll.u32 %v353, 8
    %v394 = vmul.u32.u64.compose %v393, %v392
    %v395 = vextract.low.u32 %v394
    %v396 = vextract.high.u32 %v394
    %v397 = vmul.u32.u64.compose %v393, %v388
    %v398 = vextract.low.u32 %v397
    %v399 = vextract.high.u32 %v397
    %v400 = vmul.u32 %v393, %v384
    %v401 = vadd.s32 %v396, %v398
    %vm402 = vc.u32 %v396, %v398
    %v403 = vadd.s32 %v399, 1
    %v404 = vsel %vm402, %v403, %v399
    %v405 = vadd.s32 %v400, %v404
    %v406 = vadd.s32 %v405, 536870912
    %v407 = vshrl.u32 %v406, 30
    %v408 = vshll.u32 %v407, 30
    %v409 = vsub.s32 %v405, %v408
    %vm410 = vcmp.lt.s32.totalorder %v409, 0
    %v411 = vsub.s32 0, %v409
    %v412 = vsel %vm410, %v411, %v409
    %v413 = vclz %v412
    %v414 = vsub.s32 %v413, 2
    %vm415 = vcmp.gt.s32.totalorder 0, %v414
    %v416 = vsel %vm415, 0, %v414
    %v417 = vsub.s32 32, %v416
    %v418 = vshll.u32 %v409, %v416
    %v419 = vshrl.u32 %v401, %v417
    %v420 = vor.u32 %v418, %v419
    %v421 = vsub.s32 4294967266, %v416
    %v422 = vadd.s32 %v421, 127
    %v423 = vshll.u32 %v422, 23
    %v424 = vor.u32 4788187, %v423
    %v425 = vand.u32 2147483647, %v424
    %v427 = vcvt.s32.f32 %v420
    %v428 = vmul.f32 %v427, %v425
    %v429 = vxor.u32 %v428, 2147483648
    %v430 = vsel %vm347, %v429, %v428
    %v431 = vsub.s32 4, %v407
    %v432 = vsel %vm347, %v431, %v407
    %v433 = vsel %vm346, %v31, %v430
    %v434 = vsel %vm346, 0, %v432
    %v435 = vcosq.f32.pop %v433
    %v436 = vsinq.f32.pop %v433
    %vm437 = vweird.f32 %v31
    %v438 = vand.u32 %v434, 3
    %vm439 = vcmp.lt.s32.totalorder %v438, 2
    %vm440 = vcmp.eq.s32.totalorder %v438, 0
    %v441 = vxor.u32 %v436, 2147483648
    %v442 = vsel %vm440, %v435, %v441
    %vm443 = vcmp.eq.s32.totalorder %v438, 2
    %v444 = vxor.u32 %v435, 2147483648
    %v445 = vsel %vm443, %v444, %v436
    %v446 = vsel %vm439, %v442, %v445
    %v447 = vsel %vm437, nan, %v446
    %448 = vst [vmem:[#allocation2 + $0x30] sm:$0xff] %v344
    %449 = vst [vmem:[#allocation2 + $0x38] sm:$0x7f] %v447
    %v450 = vlaneseq
    %v451 = vshrl.u32 %v450, 7
    %v452 = vsub.s32 1, %v451
    %v453 = vrot.slane %v12, %v452
    %v454 = vmul.f32 %v18, %v453
    %v455 = vmul.f32 %v23, %v453
    %v456 = vand.u32 2147483647, %v454
    %vm457 = vcmp.le.f32.partialorder %v456, 0.7853982
    %vm458 = vcmp.lt.s32.totalorder %v454, 0
    %v459 = vand.u32 %v454, 2139095040
    %v460 = vshrl.u32 %v459, 23
    %v461 = vsub.s32 %v460, 127
    %v462 = vand.u32 2147483647, %v454
    %v463 = vand.u32 %v462, 8388607
    %v464 = vor.u32 %v463, 8388608
    %v465 = vsub.s32 0, %v464
    %v466 = vadd.s32 %v461, 1
    %vm467 = vcmp.gt.s32.totalorder %v466, 0
    %v468 = vsel %vm467, %v466, 0
    %v469 = vshrl.u32 %v468, 5
    %v470 = vand.u32 %v468, 31
    %v471 = vsub.s32 32, %v470
    %v472 = vshrl.u32 683565275, %v471
    %v473 = vshll.u32 683565275, %v470
    %v474 = vshrl.u32 2475754826, %v471
    %v475 = vor.u32 %v473, %v474
    %v476 = vshll.u32 2475754826, %v470
    %v477 = vshrl.u32 2131351028, %v471
    %v478 = vor.u32 %v476, %v477
    %v479 = vshll.u32 2131351028, %v470
    %v480 = vshrl.u32 2102212464, %v471
    %v481 = vor.u32 %v479, %v480
    %v482 = vshll.u32 2102212464, %v470
    %v483 = vshrl.u32 920167782, %v471
    %v484 = vor.u32 %v482, %v483
    %v485 = vshll.u32 920167782, %v470
    %v486 = vshrl.u32 1326507024, %v471
    %v487 = vor.u32 %v485, %v486
    %vm488 = vcmp.lt.s32.totalorder %v469, 1
    %vm489 = vcmp.lt.s32.totalorder %v469, 2
    %vm490 = vcmp.lt.s32.totalorder %v469, 3
    %vm491 = vcmp.lt.s32.totalorder %v469, 4
    %v492 = vsel %vm488, %v472, %v475
    %v493 = vsel %vm491, %v481, 2102212464
    %v494 = vsel %vm490, %v478, %v493
    %v495 = vsel %vm489, %v492, %v494
    %v496 = vsel %vm488, %v475, %v478
    %v497 = vsel %vm491, %v484, 920167782
    %v498 = vsel %vm490, %v481, %v497
    %v499 = vsel %vm489, %v496, %v498
    %v500 = vsel %vm488, %v478, %v481
    %v501 = vsel %vm491, %v487, 1326507024
    %v502 = vsel %vm490, %v484, %v501
    %v503 = vsel %vm489, %v500, %v502
    %v504 = vshll.u32 %v464, 8
    %v505 = vmul.u32.u64.compose %v504, %v503
    %v506 = vextract.low.u32 %v505
    %v507 = vextract.high.u32 %v505
    %v508 = vmul.u32.u64.compose %v504, %v499
    %v509 = vextract.low.u32 %v508
    %v510 = vextract.high.u32 %v508
    %v511 = vmul.u32 %v504, %v495
    %v512 = vadd.s32 %v507, %v509
    %vm513 = vc.u32 %v507, %v509
    %v514 = vadd.s32 %v510, 1
    %v515 = vsel %vm513, %v514, %v510
    %v516 = vadd.s32 %v511, %v515
    %v517 = vadd.s32 %v516, 536870912
    %v518 = vshrl.u32 %v517, 30
    %v519 = vshll.u32 %v518, 30
    %v520 = vsub.s32 %v516, %v519
    %vm521 = vcmp.lt.s32.totalorder %v520, 0
    %v522 = vsub.s32 0, %v520
    %v523 = vsel %vm521, %v522, %v520
    %v524 = vclz %v523
    %v525 = vsub.s32 %v524, 2
    %vm526 = vcmp.gt.s32.totalorder 0, %v525
    %v527 = vsel %vm526, 0, %v525
    %v528 = vsub.s32 32, %v527
    %v529 = vshll.u32 %v520, %v527
    %v530 = vshrl.u32 %v512, %v528
    %v531 = vor.u32 %v529, %v530
    %v532 = vsub.s32 4294967266, %v527
    %v533 = vadd.s32 %v532, 127
    %v534 = vshll.u32 %v533, 23
    %v535 = vor.u32 4788187, %v534
    %v536 = vand.u32 2147483647, %v535
    %v538 = vcvt.s32.f32 %v531
    %v539 = vmul.f32 %v538, %v536
    %v540 = vxor.u32 %v539, 2147483648
    %v541 = vsel %vm458, %v540, %v539
    %v542 = vsub.s32 4, %v518
    %v543 = vsel %vm458, %v542, %v518
    %v544 = vsel %vm457, %v454, %v541
    %v545 = vsel %vm457, 0, %v543
    %v546 = vcosq.f32.pop %v544
    %v547 = vsinq.f32.pop %v544
    %vm548 = vweird.f32 %v454
    %v549 = vadd.s32 %v545, 3
    %v550 = vand.u32 %v549, 3
    %vm551 = vcmp.lt.s32.totalorder %v550, 2
    %vm552 = vcmp.eq.s32.totalorder %v550, 0
    %v553 = vxor.u32 %v547, 2147483648
    %v554 = vsel %vm552, %v546, %v553
    %vm555 = vcmp.eq.s32.totalorder %v550, 2
    %v556 = vxor.u32 %v546, 2147483648
    %v557 = vsel %vm555, %v556, %v547
    %v558 = vsel %vm551, %v554, %v557
    %v559 = vsel %vm548, nan, %v558
    %v560 = vand.u32 2147483647, %v455
    %vm561 = vcmp.le.f32.partialorder %v560, 0.7853982
    %vm562 = vcmp.lt.s32.totalorder %v455, 0
    %v563 = vand.u32 %v455, 2139095040
    %v564 = vshrl.u32 %v563, 23
    %v565 = vsub.s32 %v564, 127
    %v566 = vand.u32 2147483647, %v455
    %v567 = vand.u32 %v566, 8388607
    %v568 = vor.u32 %v567, 8388608
    %v569 = vsub.s32 0, %v568
    %v570 = vadd.s32 %v565, 1
    %vm571 = vcmp.gt.s32.totalorder %v570, 0
    %v572 = vsel %vm571, %v570, 0
    %v573 = vshrl.u32 %v572, 5
    %v574 = vand.u32 %v572, 31
    %v575 = vsub.s32 32, %v574
    %v576 = vshrl.u32 683565275, %v575
    %v577 = vshll.u32 683565275, %v574
    %v578 = vshrl.u32 2475754826, %v575
    %v579 = vor.u32 %v577, %v578
    %v580 = vshll.u32 2475754826, %v574
    %v581 = vshrl.u32 2131351028, %v575
    %v582 = vor.u32 %v580, %v581
    %v583 = vshll.u32 2131351028, %v574
    %v584 = vshrl.u32 2102212464, %v575
    %v585 = vor.u32 %v583, %v584
    %v586 = vshll.u32 2102212464, %v574
    %v587 = vshrl.u32 920167782, %v575
    %v588 = vor.u32 %v586, %v587
    %v589 = vshll.u32 920167782, %v574
    %v590 = vshrl.u32 1326507024, %v575
    %v591 = vor.u32 %v589, %v590
    %vm592 = vcmp.lt.s32.totalorder %v573, 1
    %vm593 = vcmp.lt.s32.totalorder %v573, 2
    %vm594 = vcmp.lt.s32.totalorder %v573, 3
    %vm595 = vcmp.lt.s32.totalorder %v573, 4
    %v596 = vsel %vm592, %v576, %v579
    %v597 = vsel %vm595, %v585, 2102212464
    %v598 = vsel %vm594, %v582, %v597
    %v599 = vsel %vm593, %v596, %v598
    %v600 = vsel %vm592, %v579, %v582
    %v601 = vsel %vm595, %v588, 920167782
    %v602 = vsel %vm594, %v585, %v601
    %v603 = vsel %vm593, %v600, %v602
    %v604 = vsel %vm592, %v582, %v585
    %v605 = vsel %vm595, %v591, 1326507024
    %v606 = vsel %vm594, %v588, %v605
    %v607 = vsel %vm593, %v604, %v606
    %v608 = vshll.u32 %v568, 8
    %v609 = vmul.u32.u64.compose %v608, %v607
    %v610 = vextract.low.u32 %v609
    %v611 = vextract.high.u32 %v609
    %v612 = vmul.u32.u64.compose %v608, %v603
    %v613 = vextract.low.u32 %v612
    %v614 = vextract.high.u32 %v612
    %v615 = vmul.u32 %v608, %v599
    %v616 = vadd.s32 %v611, %v613
    %vm617 = vc.u32 %v611, %v613
    %v618 = vadd.s32 %v614, 1
    %v619 = vsel %vm617, %v618, %v614
    %v620 = vadd.s32 %v615, %v619
    %v621 = vadd.s32 %v620, 536870912
    %v622 = vshrl.u32 %v621, 30
    %v623 = vshll.u32 %v622, 30
    %v624 = vsub.s32 %v620, %v623
    %vm625 = vcmp.lt.s32.totalorder %v624, 0
    %v626 = vsub.s32 0, %v624
    %v627 = vsel %vm625, %v626, %v624
    %v628 = vclz %v627
    %v629 = vsub.s32 %v628, 2
    %vm630 = vcmp.gt.s32.totalorder 0, %v629
    %v631 = vsel %vm630, 0, %v629
    %v632 = vsub.s32 32, %v631
    %v633 = vshll.u32 %v624, %v631
    %v634 = vshrl.u32 %v616, %v632
    %v635 = vor.u32 %v633, %v634
    %v636 = vsub.s32 4294967266, %v631
    %v637 = vadd.s32 %v636, 127
    %v638 = vshll.u32 %v637, 23
    %v639 = vor.u32 4788187, %v638
    %v640 = vand.u32 2147483647, %v639
    %v642 = vcvt.s32.f32 %v635
    %v643 = vmul.f32 %v642, %v640
    %v644 = vxor.u32 %v643, 2147483648
    %v645 = vsel %vm562, %v644, %v643
    %v646 = vsub.s32 4, %v622
    %v647 = vsel %vm562, %v646, %v622
    %v648 = vsel %vm561, %v455, %v645
    %v649 = vsel %vm561, 0, %v647
    %v650 = vcosq.f32.pop %v648
    %v651 = vsinq.f32.pop %v648
    %vm652 = vweird.f32 %v455
    %v653 = vadd.s32 %v649, 3
    %v654 = vand.u32 %v653, 3
    %vm655 = vcmp.lt.s32.totalorder %v654, 2
    %vm656 = vcmp.eq.s32.totalorder %v654, 0
    %v657 = vxor.u32 %v651, 2147483648
    %v658 = vsel %vm656, %v650, %v657
    %vm659 = vcmp.eq.s32.totalorder %v654, 2
    %v660 = vxor.u32 %v650, 2147483648
    %v661 = vsel %vm659, %v660, %v651
    %v662 = vsel %vm655, %v658, %v661
    %v663 = vsel %vm652, nan, %v662
    %664 = vst [vmem:[#allocation2 + $0x12] sm:$0xff] %v559
    %665 = vst [vmem:[#allocation2 + $0x1a] sm:$0x7f] %v663
    %v666 = vand.u32 2147483647, %v454
    %vm667 = vcmp.le.f32.partialorder %v666, 0.7853982
    %vm668 = vcmp.lt.s32.totalorder %v454, 0
    %v669 = vand.u32 %v454, 2139095040
    %v670 = vshrl.u32 %v669, 23
    %v671 = vsub.s32 %v670, 127
    %v672 = vand.u32 2147483647, %v454
    %v673 = vand.u32 %v672, 8388607
    %v674 = vor.u32 %v673, 8388608
    %v675 = vsub.s32 0, %v674
    %v676 = vadd.s32 %v671, 1
    %vm677 = vcmp.gt.s32.totalorder %v676, 0
    %v678 = vsel %vm677, %v676, 0
    %v679 = vshrl.u32 %v678, 5
    %v680 = vand.u32 %v678, 31
    %v681 = vsub.s32 32, %v680
    %v682 = vshrl.u32 683565275, %v681
    %v683 = vshll.u32 683565275, %v680
    %v684 = vshrl.u32 2475754826, %v681
    %v685 = vor.u32 %v683, %v684
    %v686 = vshll.u32 2475754826, %v680
    %v687 = vshrl.u32 2131351028, %v681
    %v688 = vor.u32 %v686, %v687
    %v689 = vshll.u32 2131351028, %v680
    %v690 = vshrl.u32 2102212464, %v681
    %v691 = vor.u32 %v689, %v690
    %v692 = vshll.u32 2102212464, %v680
    %v693 = vshrl.u32 920167782, %v681
    %v694 = vor.u32 %v692, %v693
    %v695 = vshll.u32 920167782, %v680
    %v696 = vshrl.u32 1326507024, %v681
    %v697 = vor.u32 %v695, %v696
    %vm698 = vcmp.lt.s32.totalorder %v679, 1
    %vm699 = vcmp.lt.s32.totalorder %v679, 2
    %vm700 = vcmp.lt.s32.totalorder %v679, 3
    %vm701 = vcmp.lt.s32.totalorder %v679, 4
    %v702 = vsel %vm698, %v682, %v685
    %v703 = vsel %vm701, %v691, 2102212464
    %v704 = vsel %vm700, %v688, %v703
    %v705 = vsel %vm699, %v702, %v704
    %v706 = vsel %vm698, %v685, %v688
    %v707 = vsel %vm701, %v694, 920167782
    %v708 = vsel %vm700, %v691, %v707
    %v709 = vsel %vm699, %v706, %v708
    %v710 = vsel %vm698, %v688, %v691
    %v711 = vsel %vm701, %v697, 1326507024
    %v712 = vsel %vm700, %v694, %v711
    %v713 = vsel %vm699, %v710, %v712
    %v714 = vshll.u32 %v674, 8
    %v715 = vmul.u32.u64.compose %v714, %v713
    %v716 = vextract.low.u32 %v715
    %v717 = vextract.high.u32 %v715
    %v718 = vmul.u32.u64.compose %v714, %v709
    %v719 = vextract.low.u32 %v718
    %v720 = vextract.high.u32 %v718
    %v721 = vmul.u32 %v714, %v705
    %v722 = vadd.s32 %v717, %v719
    %vm723 = vc.u32 %v717, %v719
    %v724 = vadd.s32 %v720, 1
    %v725 = vsel %vm723, %v724, %v720
    %v726 = vadd.s32 %v721, %v725
    %v727 = vadd.s32 %v726, 536870912
    %v728 = vshrl.u32 %v727, 30
    %v729 = vshll.u32 %v728, 30
    %v730 = vsub.s32 %v726, %v729
    %vm731 = vcmp.lt.s32.totalorder %v730, 0
    %v732 = vsub.s32 0, %v730
    %v733 = vsel %vm731, %v732, %v730
    %v734 = vclz %v733
    %v735 = vsub.s32 %v734, 2
    %vm736 = vcmp.gt.s32.totalorder 0, %v735
    %v737 = vsel %vm736, 0, %v735
    %v738 = vsub.s32 32, %v737
    %v739 = vshll.u32 %v730, %v737
    %v740 = vshrl.u32 %v722, %v738
    %v741 = vor.u32 %v739, %v740
    %v742 = vsub.s32 4294967266, %v737
    %v743 = vadd.s32 %v742, 127
    %v744 = vshll.u32 %v743, 23
    %v745 = vor.u32 4788187, %v744
    %v746 = vand.u32 2147483647, %v745
    %v748 = vcvt.s32.f32 %v741
    %v749 = vmul.f32 %v748, %v746
    %v750 = vxor.u32 %v749, 2147483648
    %v751 = vsel %vm668, %v750, %v749
    %v752 = vsub.s32 4, %v728
    %v753 = vsel %vm668, %v752, %v728
    %v754 = vsel %vm667, %v454, %v751
    %v755 = vsel %vm667, 0, %v753
    %v756 = vcosq.f32.pop %v754
    %v757 = vsinq.f32.pop %v754
    %vm758 = vweird.f32 %v454
    %v759 = vand.u32 %v755, 3
    %vm760 = vcmp.lt.s32.totalorder %v759, 2
    %vm761 = vcmp.eq.s32.totalorder %v759, 0
    %v762 = vxor.u32 %v757, 2147483648
    %v763 = vsel %vm761, %v756, %v762
    %vm764 = vcmp.eq.s32.totalorder %v759, 2
    %v765 = vxor.u32 %v756, 2147483648
    %v766 = vsel %vm764, %v765, %v757
    %v767 = vsel %vm760, %v763, %v766
    %v768 = vsel %vm758, nan, %v767
    %v769 = vand.u32 2147483647, %v455
    %vm770 = vcmp.le.f32.partialorder %v769, 0.7853982
    %vm771 = vcmp.lt.s32.totalorder %v455, 0
    %v772 = vand.u32 %v455, 2139095040
    %v773 = vshrl.u32 %v772, 23
    %v774 = vsub.s32 %v773, 127
    %v775 = vand.u32 2147483647, %v455
    %v776 = vand.u32 %v775, 8388607
    %v777 = vor.u32 %v776, 8388608
    %v778 = vsub.s32 0, %v777
    %v779 = vadd.s32 %v774, 1
    %vm780 = vcmp.gt.s32.totalorder %v779, 0
    %v781 = vsel %vm780, %v779, 0
    %v782 = vshrl.u32 %v781, 5
    %v783 = vand.u32 %v781, 31
    %v784 = vsub.s32 32, %v783
    %v785 = vshrl.u32 683565275, %v784
    %v786 = vshll.u32 683565275, %v783
    %v787 = vshrl.u32 2475754826, %v784
    %v788 = vor.u32 %v786, %v787
    %v789 = vshll.u32 2475754826, %v783
    %v790 = vshrl.u32 2131351028, %v784
    %v791 = vor.u32 %v789, %v790
    %v792 = vshll.u32 2131351028, %v783
    %v793 = vshrl.u32 2102212464, %v784
    %v794 = vor.u32 %v792, %v793
    %v795 = vshll.u32 2102212464, %v783
    %v796 = vshrl.u32 920167782, %v784
    %v797 = vor.u32 %v795, %v796
    %v798 = vshll.u32 920167782, %v783
    %v799 = vshrl.u32 1326507024, %v784
    %v800 = vor.u32 %v798, %v799
    %vm801 = vcmp.lt.s32.totalorder %v782, 1
    %vm802 = vcmp.lt.s32.totalorder %v782, 2
    %vm803 = vcmp.lt.s32.totalorder %v782, 3
    %vm804 = vcmp.lt.s32.totalorder %v782, 4
    %v805 = vsel %vm801, %v785, %v788
    %v806 = vsel %vm804, %v794, 2102212464
    %v807 = vsel %vm803, %v791, %v806
    %v808 = vsel %vm802, %v805, %v807
    %v809 = vsel %vm801, %v788, %v791
    %v810 = vsel %vm804, %v797, 920167782
    %v811 = vsel %vm803, %v794, %v810
    %v812 = vsel %vm802, %v809, %v811
    %v813 = vsel %vm801, %v791, %v794
    %v814 = vsel %vm804, %v800, 1326507024
    %v815 = vsel %vm803, %v797, %v814
    %v816 = vsel %vm802, %v813, %v815
    %v817 = vshll.u32 %v777, 8
    %v818 = vmul.u32.u64.compose %v817, %v816
    %v819 = vextract.low.u32 %v818
    %v820 = vextract.high.u32 %v818
    %v821 = vmul.u32.u64.compose %v817, %v812
    %v822 = vextract.low.u32 %v821
    %v823 = vextract.high.u32 %v821
    %v824 = vmul.u32 %v817, %v808
    %v825 = vadd.s32 %v820, %v822
    %vm826 = vc.u32 %v820, %v822
    %v827 = vadd.s32 %v823, 1
    %v828 = vsel %vm826, %v827, %v823
    %v829 = vadd.s32 %v824, %v828
    %v830 = vadd.s32 %v829, 536870912
    %v831 = vshrl.u32 %v830, 30
    %v832 = vshll.u32 %v831, 30
    %v833 = vsub.s32 %v829, %v832
    %vm834 = vcmp.lt.s32.totalorder %v833, 0
    %v835 = vsub.s32 0, %v833
    %v836 = vsel %vm834, %v835, %v833
    %v837 = vclz %v836
    %v838 = vsub.s32 %v837, 2
    %vm839 = vcmp.gt.s32.totalorder 0, %v838
    %v840 = vsel %vm839, 0, %v838
    %v841 = vsub.s32 32, %v840
    %v842 = vshll.u32 %v833, %v840
    %v843 = vshrl.u32 %v825, %v841
    %v844 = vor.u32 %v842, %v843
    %v845 = vsub.s32 4294967266, %v840
    %v846 = vadd.s32 %v845, 127
    %v847 = vshll.u32 %v846, 23
    %v848 = vor.u32 4788187, %v847
    %v849 = vand.u32 2147483647, %v848
    %v851 = vcvt.s32.f32 %v844
    %v852 = vmul.f32 %v851, %v849
    %v853 = vxor.u32 %v852, 2147483648
    %v854 = vsel %vm771, %v853, %v852
    %v855 = vsub.s32 4, %v831
    %v856 = vsel %vm771, %v855, %v831
    %v857 = vsel %vm770, %v455, %v854
    %v858 = vsel %vm770, 0, %v856
    %v859 = vcosq.f32.pop %v857
    %v860 = vsinq.f32.pop %v857
    %vm861 = vweird.f32 %v455
    %v862 = vand.u32 %v858, 3
    %vm863 = vcmp.lt.s32.totalorder %v862, 2
    %vm864 = vcmp.eq.s32.totalorder %v862, 0
    %v865 = vxor.u32 %v860, 2147483648
    %v866 = vsel %vm864, %v859, %v865
    %vm867 = vcmp.eq.s32.totalorder %v862, 2
    %v868 = vxor.u32 %v859, 2147483648
    %v869 = vsel %vm867, %v868, %v860
    %v870 = vsel %vm863, %v866, %v869
    %v871 = vsel %vm861, nan, %v870
    %872 = vst [vmem:[#allocation2 + $0x3f] sm:$0xff] %v768
    %873 = vst [vmem:[#allocation2 + $0x47] sm:$0x7f] %v871
    %v874 = vlaneseq
    %v875 = vshrl.u32 %v874, 7
    %v876 = vsub.s32 2, %v875
    %v877 = vrot.slane %v12, %v876
    %v878 = vmul.f32 %v18, %v877
    %v879 = vmul.f32 %v23, %v877
    %v880 = vand.u32 2147483647, %v878
    %vm881 = vcmp.le.f32.partialorder %v880, 0.7853982
    %vm882 = vcmp.lt.s32.totalorder %v878, 0
    %v883 = vand.u32 %v878, 2139095040
    %v884 = vshrl.u32 %v883, 23
    %v885 = vsub.s32 %v884, 127
    %v886 = vand.u32 2147483647, %v878
    %v887 = vand.u32 %v886, 8388607
    %v888 = vor.u32 %v887, 8388608
    %v889 = vsub.s32 0, %v888
    %v890 = vadd.s32 %v885, 1
    %vm891 = vcmp.gt.s32.totalorder %v890, 0
    %v892 = vsel %vm891, %v890, 0
    %v893 = vshrl.u32 %v892, 5
    %v894 = vand.u32 %v892, 31
    %v895 = vsub.s32 32, %v894
    %v896 = vshrl.u32 683565275, %v895
    %v897 = vshll.u32 683565275, %v894
    %v898 = vshrl.u32 2475754826, %v895
    %v899 = vor.u32 %v897, %v898
    %v900 = vshll.u32 2475754826, %v894
    %v901 = vshrl.u32 2131351028, %v895
    %v902 = vor.u32 %v900, %v901
    %v903 = vshll.u32 2131351028, %v894
    %v904 = vshrl.u32 2102212464, %v895
    %v905 = vor.u32 %v903, %v904
    %v906 = vshll.u32 2102212464, %v894
    %v907 = vshrl.u32 920167782, %v895
    %v908 = vor.u32 %v906, %v907
    %v909 = vshll.u32 920167782, %v894
    %v910 = vshrl.u32 1326507024, %v895
    %v911 = vor.u32 %v909, %v910
    %vm912 = vcmp.lt.s32.totalorder %v893, 1
    %vm913 = vcmp.lt.s32.totalorder %v893, 2
    %vm914 = vcmp.lt.s32.totalorder %v893, 3
    %vm915 = vcmp.lt.s32.totalorder %v893, 4
    %v916 = vsel %vm912, %v896, %v899
    %v917 = vsel %vm915, %v905, 2102212464
    %v918 = vsel %vm914, %v902, %v917
    %v919 = vsel %vm913, %v916, %v918
    %v920 = vsel %vm912, %v899, %v902
    %v921 = vsel %vm915, %v908, 920167782
    %v922 = vsel %vm914, %v905, %v921
    %v923 = vsel %vm913, %v920, %v922
    %v924 = vsel %vm912, %v902, %v905
    %v925 = vsel %vm915, %v911, 1326507024
    %v926 = vsel %vm914, %v908, %v925
    %v927 = vsel %vm913, %v924, %v926
    %v928 = vshll.u32 %v888, 8
    %v929 = vmul.u32.u64.compose %v928, %v927
    %v930 = vextract.low.u32 %v929
    %v931 = vextract.high.u32 %v929
    %v932 = vmul.u32.u64.compose %v928, %v923
    %v933 = vextract.low.u32 %v932
    %v934 = vextract.high.u32 %v932
    %v935 = vmul.u32 %v928, %v919
    %v936 = vadd.s32 %v931, %v933
    %vm937 = vc.u32 %v931, %v933
    %v938 = vadd.s32 %v934, 1
    %v939 = vsel %vm937, %v938, %v934
    %v940 = vadd.s32 %v935, %v939
    %v941 = vadd.s32 %v940, 536870912
    %v942 = vshrl.u32 %v941, 30
    %v943 = vshll.u32 %v942, 30
    %v944 = vsub.s32 %v940, %v943
    %vm945 = vcmp.lt.s32.totalorder %v944, 0
    %v946 = vsub.s32 0, %v944
    %v947 = vsel %vm945, %v946, %v944
    %v948 = vclz %v947
    %v949 = vsub.s32 %v948, 2
    %vm950 = vcmp.gt.s32.totalorder 0, %v949
    %v951 = vsel %vm950, 0, %v949
    %v952 = vsub.s32 32, %v951
    %v953 = vshll.u32 %v944, %v951
    %v954 = vshrl.u32 %v936, %v952
    %v955 = vor.u32 %v953, %v954
    %v956 = vsub.s32 4294967266, %v951
    %v957 = vadd.s32 %v956, 127
    %v958 = vshll.u32 %v957, 23
    %v959 = vor.u32 4788187, %v958
    %v960 = vand.u32 2147483647, %v959
    %v962 = vcvt.s32.f32 %v955
    %v963 = vmul.f32 %v962, %v960
    %v964 = vxor.u32 %v963, 2147483648
    %v965 = vsel %vm882, %v964, %v963
    %v966 = vsub.s32 4, %v942
    %v967 = vsel %vm882, %v966, %v942
    %v968 = vsel %vm881, %v878, %v965
    %v969 = vsel %vm881, 0, %v967
    %v970 = vcosq.f32.pop %v968
    %v971 = vsinq.f32.pop %v968
    %vm972 = vweird.f32 %v878
    %v973 = vadd.s32 %v969, 3
    %v974 = vand.u32 %v973, 3
    %vm975 = vcmp.lt.s32.totalorder %v974, 2
    %vm976 = vcmp.eq.s32.totalorder %v974, 0
    %v977 = vxor.u32 %v971, 2147483648
    %v978 = vsel %vm976, %v970, %v977
    %vm979 = vcmp.eq.s32.totalorder %v974, 2
    %v980 = vxor.u32 %v970, 2147483648
    %v981 = vsel %vm979, %v980, %v971
    %v982 = vsel %vm975, %v978, %v981
    %v983 = vsel %vm972, nan, %v982
    %v984 = vand.u32 2147483647, %v879
    %vm985 = vcmp.le.f32.partialorder %v984, 0.7853982
    %vm986 = vcmp.lt.s32.totalorder %v879, 0
    %v987 = vand.u32 %v879, 2139095040
    %v988 = vshrl.u32 %v987, 23
    %v989 = vsub.s32 %v988, 127
    %v990 = vand.u32 2147483647, %v879
    %v991 = vand.u32 %v990, 8388607
    %v992 = vor.u32 %v991, 8388608
    %v993 = vsub.s32 0, %v992
    %v994 = vadd.s32 %v989, 1
    %vm995 = vcmp.gt.s32.totalorder %v994, 0
    %v996 = vsel %vm995, %v994, 0
    %v997 = vshrl.u32 %v996, 5
    %v998 = vand.u32 %v996, 31
    %v999 = vsub.s32 32, %v998
    %v1000 = vshrl.u32 683565275, %v999
    %v1001 = vshll.u32 683565275, %v998
    %v1002 = vshrl.u32 2475754826, %v999
    %v1003 = vor.u32 %v1001, %v1002
    %v1004 = vshll.u32 2475754826, %v998
    %v1005 = vshrl.u32 2131351028, %v999
    %v1006 = vor.u32 %v1004, %v1005
    %v1007 = vshll.u32 2131351028, %v998
    %v1008 = vshrl.u32 2102212464, %v999
    %v1009 = vor.u32 %v1007, %v1008
    %v1010 = vshll.u32 2102212464, %v998
    %v1011 = vshrl.u32 920167782, %v999
    %v1012 = vor.u32 %v1010, %v1011
    %v1013 = vshll.u32 920167782, %v998
    %v1014 = vshrl.u32 1326507024, %v999
    %v1015 = vor.u32 %v1013, %v1014
    %vm1016 = vcmp.lt.s32.totalorder %v997, 1
    %vm1017 = vcmp.lt.s32.totalorder %v997, 2
    %vm1018 = vcmp.lt.s32.totalorder %v997, 3
    %vm1019 = vcmp.lt.s32.totalorder %v997, 4
    %v1020 = vsel %vm1016, %v1000, %v1003
    %v1021 = vsel %vm1019, %v1009, 2102212464
    %v1022 = vsel %vm1018, %v1006, %v1021
    %v1023 = vsel %vm1017, %v1020, %v1022
    %v1024 = vsel %vm1016, %v1003, %v1006
    %v1025 = vsel %vm1019, %v1012, 920167782
    %v1026 = vsel %vm1018, %v1009, %v1025
    %v1027 = vsel %vm1017, %v1024, %v1026
    %v1028 = vsel %vm1016, %v1006, %v1009
    %v1029 = vsel %vm1019, %v1015, 1326507024
    %v1030 = vsel %vm1018, %v1012, %v1029
    %v1031 = vsel %vm1017, %v1028, %v1030
    %v1032 = vshll.u32 %v992, 8
    %v1033 = vmul.u32.u64.compose %v1032, %v1031
    %v1034 = vextract.low.u32 %v1033
    %v1035 = vextract.high.u32 %v1033
    %v1036 = vmul.u32.u64.compose %v1032, %v1027
    %v1037 = vextract.low.u32 %v1036
    %v1038 = vextract.high.u32 %v1036
    %v1039 = vmul.u32 %v1032, %v1023
    %v1040 = vadd.s32 %v1035, %v1037
    %vm1041 = vc.u32 %v1035, %v1037
    %v1042 = vadd.s32 %v1038, 1
    %v1043 = vsel %vm1041, %v1042, %v1038
    %v1044 = vadd.s32 %v1039, %v1043
    %v1045 = vadd.s32 %v1044, 536870912
    %v1046 = vshrl.u32 %v1045, 30
    %v1047 = vshll.u32 %v1046, 30
    %v1048 = vsub.s32 %v1044, %v1047
    %vm1049 = vcmp.lt.s32.totalorder %v1048, 0
    %v1050 = vsub.s32 0, %v1048
    %v1051 = vsel %vm1049, %v1050, %v1048
    %v1052 = vclz %v1051
    %v1053 = vsub.s32 %v1052, 2
    %vm1054 = vcmp.gt.s32.totalorder 0, %v1053
    %v1055 = vsel %vm1054, 0, %v1053
    %v1056 = vsub.s32 32, %v1055
    %v1057 = vshll.u32 %v1048, %v1055
    %v1058 = vshrl.u32 %v1040, %v1056
    %v1059 = vor.u32 %v1057, %v1058
    %v1060 = vsub.s32 4294967266, %v1055
    %v1061 = vadd.s32 %v1060, 127
    %v1062 = vshll.u32 %v1061, 23
    %v1063 = vor.u32 4788187, %v1062
    %v1064 = vand.u32 2147483647, %v1063
    %v1066 = vcvt.s32.f32 %v1059
    %v1067 = vmul.f32 %v1066, %v1064
    %v1068 = vxor.u32 %v1067, 2147483648
    %v1069 = vsel %vm986, %v1068, %v1067
    %v1070 = vsub.s32 4, %v1046
    %v1071 = vsel %vm986, %v1070, %v1046
    %v1072 = vsel %vm985, %v879, %v1069
    %v1073 = vsel %vm985, 0, %v1071
    %v1074 = vcosq.f32.pop %v1072
    %v1075 = vsinq.f32.pop %v1072
    %vm1076 = vweird.f32 %v879
    %v1077 = vadd.s32 %v1073, 3
    %v1078 = vand.u32 %v1077, 3
    %vm1079 = vcmp.lt.s32.totalorder %v1078, 2
    %vm1080 = vcmp.eq.s32.totalorder %v1078, 0
    %v1081 = vxor.u32 %v1075, 2147483648
    %v1082 = vsel %vm1080, %v1074, %v1081
    %vm1083 = vcmp.eq.s32.totalorder %v1078, 2
    %v1084 = vxor.u32 %v1074, 2147483648
    %v1085 = vsel %vm1083, %v1084, %v1075
    %v1086 = vsel %vm1079, %v1082, %v1085
    %v1087 = vsel %vm1076, nan, %v1086
    %1088 = vst [vmem:[#allocation2 + $0x21] sm:$0xff] %v983
    %1089 = vst [vmem:[#allocation2 + $0x29] sm:$0x7f] %v1087
    %v1090 = vand.u32 2147483647, %v878
    %vm1091 = vcmp.le.f32.partialorder %v1090, 0.7853982
    %vm1092 = vcmp.lt.s32.totalorder %v878, 0
    %v1093 = vand.u32 %v878, 2139095040
    %v1094 = vshrl.u32 %v1093, 23
    %v1095 = vsub.s32 %v1094, 127
    %v1096 = vand.u32 2147483647, %v878
    %v1097 = vand.u32 %v1096, 8388607
    %v1098 = vor.u32 %v1097, 8388608
    %v1099 = vsub.s32 0, %v1098
    %v1100 = vadd.s32 %v1095, 1
    %vm1101 = vcmp.gt.s32.totalorder %v1100, 0
    %v1102 = vsel %vm1101, %v1100, 0
    %v1103 = vshrl.u32 %v1102, 5
    %v1104 = vand.u32 %v1102, 31
    %v1105 = vsub.s32 32, %v1104
    %v1106 = vshrl.u32 683565275, %v1105
    %v1107 = vshll.u32 683565275, %v1104
    %v1108 = vshrl.u32 2475754826, %v1105
    %v1109 = vor.u32 %v1107, %v1108
    %v1110 = vshll.u32 2475754826, %v1104
    %v1111 = vshrl.u32 2131351028, %v1105
    %v1112 = vor.u32 %v1110, %v1111
    %v1113 = vshll.u32 2131351028, %v1104
    %v1114 = vshrl.u32 2102212464, %v1105
    %v1115 = vor.u32 %v1113, %v1114
    %v1116 = vshll.u32 2102212464, %v1104
    %v1117 = vshrl.u32 920167782, %v1105
    %v1118 = vor.u32 %v1116, %v1117
    %v1119 = vshll.u32 920167782, %v1104
    %v1120 = vshrl.u32 1326507024, %v1105
    %v1121 = vor.u32 %v1119, %v1120
    %vm1122 = vcmp.lt.s32.totalorder %v1103, 1
    %vm1123 = vcmp.lt.s32.totalorder %v1103, 2
    %vm1124 = vcmp.lt.s32.totalorder %v1103, 3
    %vm1125 = vcmp.lt.s32.totalorder %v1103, 4
    %v1126 = vsel %vm1122, %v1106, %v1109
    %v1127 = vsel %vm1125, %v1115, 2102212464
    %v1128 = vsel %vm1124, %v1112, %v1127
    %v1129 = vsel %vm1123, %v1126, %v1128
    %v1130 = vsel %vm1122, %v1109, %v1112
    %v1131 = vsel %vm1125, %v1118, 920167782
    %v1132 = vsel %vm1124, %v1115, %v1131
    %v1133 = vsel %vm1123, %v1130, %v1132
    %v1134 = vsel %vm1122, %v1112, %v1115
    %v1135 = vsel %vm1125, %v1121, 1326507024
    %v1136 = vsel %vm1124, %v1118, %v1135
    %v1137 = vsel %vm1123, %v1134, %v1136
    %v1138 = vshll.u32 %v1098, 8
    %v1139 = vmul.u32.u64.compose %v1138, %v1137
    %v1140 = vextract.low.u32 %v1139
    %v1141 = vextract.high.u32 %v1139
    %v1142 = vmul.u32.u64.compose %v1138, %v1133
    %v1143 = vextract.low.u32 %v1142
    %v1144 = vextract.high.u32 %v1142
    %v1145 = vmul.u32 %v1138, %v1129
    %v1146 = vadd.s32 %v1141, %v1143
    %vm1147 = vc.u32 %v1141, %v1143
    %v1148 = vadd.s32 %v1144, 1
    %v1149 = vsel %vm1147, %v1148, %v1144
    %v1150 = vadd.s32 %v1145, %v1149
    %v1151 = vadd.s32 %v1150, 536870912
    %v1152 = vshrl.u32 %v1151, 30
    %v1153 = vshll.u32 %v1152, 30
    %v1154 = vsub.s32 %v1150, %v1153
    %vm1155 = vcmp.lt.s32.totalorder %v1154, 0
    %v1156 = vsub.s32 0, %v1154
    %v1157 = vsel %vm1155, %v1156, %v1154
    %v1158 = vclz %v1157
    %v1159 = vsub.s32 %v1158, 2
    %vm1160 = vcmp.gt.s32.totalorder 0, %v1159
    %v1161 = vsel %vm1160, 0, %v1159
    %v1162 = vsub.s32 32, %v1161
    %v1163 = vshll.u32 %v1154, %v1161
    %v1164 = vshrl.u32 %v1146, %v1162
    %v1165 = vor.u32 %v1163, %v1164
    %v1166 = vsub.s32 4294967266, %v1161
    %v1167 = vadd.s32 %v1166, 127
    %v1168 = vshll.u32 %v1167, 23
    %v1169 = vor.u32 4788187, %v1168
    %v1170 = vand.u32 2147483647, %v1169
    %v1172 = vcvt.s32.f32 %v1165
    %v1173 = vmul.f32 %v1172, %v1170
    %v1174 = vxor.u32 %v1173, 2147483648
    %v1175 = vsel %vm1092, %v1174, %v1173
    %v1176 = vsub.s32 4, %v1152
    %v1177 = vsel %vm1092, %v1176, %v1152
    %v1178 = vsel %vm1091, %v878, %v1175
    %v1179 = vsel %vm1091, 0, %v1177
    %v1180 = vcosq.f32.pop %v1178
    %v1181 = vsinq.f32.pop %v1178
    %vm1182 = vweird.f32 %v878
    %v1183 = vand.u32 %v1179, 3
    %vm1184 = vcmp.lt.s32.totalorder %v1183, 2
    %vm1185 = vcmp.eq.s32.totalorder %v1183, 0
    %v1186 = vxor.u32 %v1181, 2147483648
    %v1187 = vsel %vm1185, %v1180, %v1186
    %vm1188 = vcmp.eq.s32.totalorder %v1183, 2
    %v1189 = vxor.u32 %v1180, 2147483648
    %v1190 = vsel %vm1188, %v1189, %v1181
    %v1191 = vsel %vm1184, %v1187, %v1190
    %v1192 = vsel %vm1182, nan, %v1191
    %v1193 = vand.u32 2147483647, %v879
    %vm1194 = vcmp.le.f32.partialorder %v1193, 0.7853982
    %vm1195 = vcmp.lt.s32.totalorder %v879, 0
    %v1196 = vand.u32 %v879, 2139095040
    %v1197 = vshrl.u32 %v1196, 23
    %v1198 = vsub.s32 %v1197, 127
    %v1199 = vand.u32 2147483647, %v879
    %v1200 = vand.u32 %v1199, 8388607
    %v1201 = vor.u32 %v1200, 8388608
    %v1202 = vsub.s32 0, %v1201
    %v1203 = vadd.s32 %v1198, 1
    %vm1204 = vcmp.gt.s32.totalorder %v1203, 0
    %v1205 = vsel %vm1204, %v1203, 0
    %v1206 = vshrl.u32 %v1205, 5
    %v1207 = vand.u32 %v1205, 31
    %v1208 = vsub.s32 32, %v1207
    %v1209 = vshrl.u32 683565275, %v1208
    %v1210 = vshll.u32 683565275, %v1207
    %v1211 = vshrl.u32 2475754826, %v1208
    %v1212 = vor.u32 %v1210, %v1211
    %v1213 = vshll.u32 2475754826, %v1207
    %v1214 = vshrl.u32 2131351028, %v1208
    %v1215 = vor.u32 %v1213, %v1214
    %v1216 = vshll.u32 2131351028, %v1207
    %v1217 = vshrl.u32 2102212464, %v1208
    %v1218 = vor.u32 %v1216, %v1217
    %v1219 = vshll.u32 2102212464, %v1207
    %v1220 = vshrl.u32 920167782, %v1208
    %v1221 = vor.u32 %v1219, %v1220
    %v1222 = vshll.u32 920167782, %v1207
    %v1223 = vshrl.u32 1326507024, %v1208
    %v1224 = vor.u32 %v1222, %v1223
    %vm1225 = vcmp.lt.s32.totalorder %v1206, 1
    %vm1226 = vcmp.lt.s32.totalorder %v1206, 2
    %vm1227 = vcmp.lt.s32.totalorder %v1206, 3
    %vm1228 = vcmp.lt.s32.totalorder %v1206, 4
    %v1229 = vsel %vm1225, %v1209, %v1212
    %v1230 = vsel %vm1228, %v1218, 2102212464
    %v1231 = vsel %vm1227, %v1215, %v1230
    %v1232 = vsel %vm1226, %v1229, %v1231
    %v1233 = vsel %vm1225, %v1212, %v1215
    %v1234 = vsel %vm1228, %v1221, 920167782
    %v1235 = vsel %vm1227, %v1218, %v1234
    %v1236 = vsel %vm1226, %v1233, %v1235
    %v1237 = vsel %vm1225, %v1215, %v1218
    %v1238 = vsel %vm1228, %v1224, 1326507024
    %v1239 = vsel %vm1227, %v1221, %v1238
    %v1240 = vsel %vm1226, %v1237, %v1239
    %v1241 = vshll.u32 %v1201, 8
    %v1242 = vmul.u32.u64.compose %v1241, %v1240
    %v1243 = vextract.low.u32 %v1242
    %v1244 = vextract.high.u32 %v1242
    %v1245 = vmul.u32.u64.compose %v1241, %v1236
    %v1246 = vextract.low.u32 %v1245
    %v1247 = vextract.high.u32 %v1245
    %v1248 = vmul.u32 %v1241, %v1232
    %v1249 = vadd.s32 %v1244, %v1246
    %vm1250 = vc.u32 %v1244, %v1246
    %v1251 = vadd.s32 %v1247, 1
    %v1252 = vsel %vm1250, %v1251, %v1247
    %v1253 = vadd.s32 %v1248, %v1252
    %v1254 = vadd.s32 %v1253, 536870912
    %v1255 = vshrl.u32 %v1254, 30
    %v1256 = vshll.u32 %v1255, 30
    %v1257 = vsub.s32 %v1253, %v1256
    %vm1258 = vcmp.lt.s32.totalorder %v1257, 0
    %v1259 = vsub.s32 0, %v1257
    %v1260 = vsel %vm1258, %v1259, %v1257
    %v1261 = vclz %v1260
    %v1262 = vsub.s32 %v1261, 2
    %vm1263 = vcmp.gt.s32.totalorder 0, %v1262
    %v1264 = vsel %vm1263, 0, %v1262
    %v1265 = vsub.s32 32, %v1264
    %v1266 = vshll.u32 %v1257, %v1264
    %v1267 = vshrl.u32 %v1249, %v1265
    %v1268 = vor.u32 %v1266, %v1267
    %v1269 = vsub.s32 4294967266, %v1264
    %v1270 = vadd.s32 %v1269, 127
    %v1271 = vshll.u32 %v1270, 23
    %v1272 = vor.u32 4788187, %v1271
    %v1273 = vand.u32 2147483647, %v1272
    %v1275 = vcvt.s32.f32 %v1268
    %v1276 = vmul.f32 %v1275, %v1273
    %v1277 = vxor.u32 %v1276, 2147483648
    %v1278 = vsel %vm1195, %v1277, %v1276
    %v1279 = vsub.s32 4, %v1255
    %v1280 = vsel %vm1195, %v1279, %v1255
    %v1281 = vsel %vm1194, %v879, %v1278
    %v1282 = vsel %vm1194, 0, %v1280
    %v1283 = vcosq.f32.pop %v1281
    %v1284 = vsinq.f32.pop %v1281
    %vm1285 = vweird.f32 %v879
    %v1286 = vand.u32 %v1282, 3
    %vm1287 = vcmp.lt.s32.totalorder %v1286, 2
    %vm1288 = vcmp.eq.s32.totalorder %v1286, 0
    %v1289 = vxor.u32 %v1284, 2147483648
    %v1290 = vsel %vm1288, %v1283, %v1289
    %vm1291 = vcmp.eq.s32.totalorder %v1286, 2
    %v1292 = vxor.u32 %v1283, 2147483648
    %v1293 = vsel %vm1291, %v1292, %v1284
    %v1294 = vsel %vm1287, %v1290, %v1293
    %v1295 = vsel %vm1285, nan, %v1294
    %1296 = vst [vmem:[#allocation2 + $0x4e] sm:$0xff] %v1192
    %1297 = vst [vmem:[#allocation2 + $0x56] sm:$0x7f] %v1295
    %v1298 = vld [vmem:[#allocation2] sm:$0xff]
    %v1299 = vld [vmem:[#allocation2 + $0x8] sm:$0xff]
    %v1300 = vld [vmem:[#allocation2 + $0x10] sm:$0xff]
    %v1301 = vld [vmem:[#allocation2 + $0x18] sm:$0xff]
    %v1302 = vld [vmem:[#allocation2 + $0x20] sm:$0xff]
    %v1303 = vld [vmem:[#allocation2 + $0x28] sm:$0xff]
    %v1304 = vld [vmem:[#allocation2 + $0x30] sm:$0xff]
    %v1305 = vld [vmem:[#allocation2 + $0x38] sm:$0xff]
    %v1306 = vld [vmem:[#allocation2 + $0x40] sm:$0xff]
    %v1307 = vld [vmem:[#allocation2 + $0x48] sm:$0xff]
    %v1308 = vld [vmem:[#allocation2 + $0x50] sm:$0xff]
    %v1309 = vld [vmem:[#allocation2 + $0x58] sm:$0xff]
    %v1310 = vld [vmem:[#allocation2 + $0x60] sm:$0xff]
    %v1311 = vld [vmem:[#allocation2 + $0x68] sm:$0xff]
    %v1312 = vld [vmem:[#allocation2 + $0x70] sm:$0xff]
    %v1313 = vld [vmem:[#allocation2 + $0x78] sm:$0xff]
    %1314 = vxpose.xlu0.b32.start [1/16] %v1298, 128
    %1315 = vxpose.xlu0.b32.cont [2/16] %v1299, 128
    %1316 = vxpose.xlu0.b32.cont [3/16] %v1300, 128
    %1317 = vxpose.xlu0.b32.cont [4/16] %v1301, 128
    %1318 = vxpose.xlu0.b32.cont [5/16] %v1302, 128
    %1319 = vxpose.xlu0.b32.cont [6/16] %v1303, 128
    %1320 = vxpose.xlu0.b32.cont [7/16] %v1304, 128
    %1321 = vxpose.xlu0.b32.cont [8/16] %v1305, 128
    %1322 = vxpose.xlu0.b32.cont [9/16] %v1306, 128
    %1323 = vxpose.xlu0.b32.cont [10/16] %v1307, 128
    %1324 = vxpose.xlu0.b32.cont [11/16] %v1308, 128
    %1325 = vxpose.xlu0.b32.cont [12/16] %v1309, 128
    %1326 = vxpose.xlu0.b32.cont [13/16] %v1310, 128
    %1327 = vxpose.xlu0.b32.cont [14/16] %v1311, 128
    %1328 = vxpose.xlu0.b32.cont [15/16] %v1312, 128
    %1329 = vxpose.xlu0.b32.end [16/16] %v1313, 128
    %v1330 = vpop.trf.xlu0
    %v1331 = vpop.trf.xlu0
    %v1332 = vpop.trf.xlu0
    %v1333 = vpop.trf.xlu0
    %v1334 = vpop.trf.xlu0
    %v1335 = vpop.trf.xlu0
    %v1336 = vpop.trf.xlu0
    %v1337 = vpop.trf.xlu0
    %v1338 = vpop.trf.xlu0
    %v1339 = vpop.trf.xlu0
    %v1340 = vpop.trf.xlu0
    %v1341 = vpop.trf.xlu0
    %v1342 = vpop.trf.xlu0
    %v1343 = vpop.trf.xlu0
    %v1344 = vpop.trf.xlu0
    %v1345 = vpop.trf.xlu0
    %vm1346 = vcmask 760832
    %1347 = vst.msk [vmem:[#allocation3] sm:$0xff] %vm1346, %v1330
    %1348 = vst.msk [vmem:[#allocation3 + $0x8] sm:$0xff] %vm1346, %v1331
    %1349 = vst.msk [vmem:[#allocation3 + $0x10] sm:$0xff] %vm1346, %v1332
    %1350 = vst.msk [vmem:[#allocation3 + $0x18] sm:$0xff] %vm1346, %v1333
    %1351 = vst.msk [vmem:[#allocation3 + $0x20] sm:$0xff] %vm1346, %v1334
    %1352 = vst.msk [vmem:[#allocation3 + $0x28] sm:$0xff] %vm1346, %v1335
    %1353 = vst.msk [vmem:[#allocation3 + $0x30] sm:$0xff] %vm1346, %v1336
    %1354 = vst.msk [vmem:[#allocation3 + $0x38] sm:$0xff] %vm1346, %v1337
    %1355 = vst.msk [vmem:[#allocation3 + $0x40] sm:$0xff] %vm1346, %v1338
    %1356 = vst.msk [vmem:[#allocation3 + $0x48] sm:$0xff] %vm1346, %v1339
    %1357 = vst.msk [vmem:[#allocation3 + $0x50] sm:$0xff] %vm1346, %v1340
    %1358 = vst.msk [vmem:[#allocation3 + $0x58] sm:$0xff] %vm1346, %v1341
    %1359 = vst.msk [vmem:[#allocation3 + $0x60] sm:$0xff] %vm1346, %v1342
    %1360 = vst.msk [vmem:[#allocation3 + $0x68] sm:$0xff] %vm1346, %v1343
    %1361 = vst.msk [vmem:[#allocation3 + $0x70] sm:$0xff] %vm1346, %v1344
    %1362 = vst.msk [vmem:[#allocation3 + $0x78] sm:$0xff] %vm1346, %v1345
    // Predicated region
    $region10: #{tpu_custom_call.1} parent=1 // pred_check
      _
    $region11: #{tpu_custom_call.1} parent=1 // pred_check_branch
      %1364 = sbr.rel (0) target = $region13
    $region12: #{tpu_custom_call.1} parent=1 // pred_region
      %s1366 = ssub.s32 2048, 256
      %1367 = vsyncadd [#allocation4], %s1366
      %s1368 = sshll.u32 [#allocation3], 4
      %s1369 = int_to_ptr.vmem [resolvable:$true] %s1368
      %1374 = dma.vmem_to_hbm [thread:$0]  %s1369, 256, %s2, [#allocation4], 128, 128, 8
    $region13: #{tpu_custom_call.1} parent=1 // pred_fallthru
      _
    // Predicated region
    $region14: #{tpu_custom_call.1} parent=1 // pred_check
      _
    $region15: #{tpu_custom_call.1} parent=1 // pred_check_branch
      %1376 = sbr.rel (0) target = $region17
    $region16: #{tpu_custom_call.1} parent=1 // pred_region
      %1377 = dma.done [#allocation4], 2048
    $region17: #{tpu_custom_call.1} parent=1 // pred_fallthru
      _
    %1378 = vsyncpa [#allocation4], 1

</llo_original>
